<compile_context>
chip_gen: v5e
topology: v5e:2x2
jax: 0.10.0
libtpu: 0.0.40
codegen_flags: <defaults>
</compile_context>

<pallas_src>
import jax
import jax.numpy as jnp
from jax.experimental import pallas as pl
from jax.experimental.pallas import tpu as pltpu

_LANES = 128          # lane width of a vreg (last dim of every block)
_MAX_ROW_TILE = 4096  # rows of 128 lanes per block (4096*128 f32 = 2 MiB/plane)


def _source_brightness_kernel(params_ref, grid_ref, out_ref):
    """One grid step handles one (batch, row-tile) block.

    params_ref : SMEM, f32[4]            -> (x0, y0, -0.5/sigma^2, amp)
    grid_ref   : VMEM, f32[2, th, 128]   (batch dim squeezed by BlockSpec)
    out_ref    : VMEM, f32[th, 128]
    """
    x0 = params_ref[0]
    y0 = params_ref[1]
    neg_half_inv_sigma2 = params_ref[2]
    amp = params_ref[3]

    dx = grid_ref[0] - x0          # (th, 128)
    dy = grid_ref[1] - y0          # (th, 128)
    r2 = dx * dx + dy * dy

    out_ref[...] = amp * jnp.exp(r2 * neg_half_inv_sigma2)


def source_model_forward(source_grid, params):
    """Compute source brightness on the source grid.

    source_grid : f32[B, 2, H, W]   (channel 0 = x coords, channel 1 = y coords)
    params      : f32[4]            (x0, y0, sigma, amp)
    returns     : f32[B, H, W]
    """
    B, C, H, W = source_grid.shape
    assert C == 2, "source_grid must have 2 coordinate channels (x, y)"

    N = H * W
    pad = (-N) % _LANES
    n_padded = N + pad
    n_rows = n_padded // _LANES

    # Flatten the spatial plane (free reshape), pad to a lane-dense width only
    # if needed, then view as [B, 2, Nr, 128] so every block is (th, 128).
    flat = source_grid.astype(jnp.float32).reshape(B, C, N)
    if pad:
        flat = jnp.pad(flat, ((0, 0), (0, 0), (0, pad)))
    lanes = flat.reshape(B, C, n_rows, _LANES)

    # Largest row tile that fits comfortably double-buffered in scoped VMEM on
    # every generation (v5e/v6e/v7x); tiny problems collapse to one block.
    row_tile = n_rows if n_rows <= _MAX_ROW_TILE else _MAX_ROW_TILE
    num_row_tiles = pl.cdiv(n_rows, row_tile)

    # Hoist the scalar setup: pass (x0, y0, -0.5/sigma^2, amp) in SMEM.
    sigma = params[2]
    kparams = jnp.stack(
        [params[0], params[1], -0.5 / (sigma * sigma), params[3]]
    ).astype(jnp.float32)

    n_elem = B * n_rows * _LANES
    cost = pl.CostEstimate(
        flops=6 * n_elem,                    # 2 sub, 2 mul, 1 add, 1 scale
        transcendentals=n_elem,              # one exp per element
        bytes_accessed=(C + 1) * n_elem * 4  # 2 coord planes in + 1 plane out
    )

    out = pl.pallas_call(
        _source_brightness_kernel,
        out_shape=jax.ShapeDtypeStruct((B, n_rows, _LANES), jnp.float32),
        grid=(B, num_row_tiles),
        in_specs=[
            # Small parameter vector lives in SMEM, shared across grid steps.
            pl.BlockSpec(memory_space=pltpu.MemorySpace.SMEM),
            # One (batch, row-tile) block per step; batch dim squeezed out.
            pl.BlockSpec((None, C, row_tile, _LANES),
                         lambda b, t: (b, 0, t, 0)),
        ],
        out_specs=pl.BlockSpec((None, row_tile, _LANES),
                               lambda b, t: (b, t, 0)),
        compiler_params=pltpu.CompilerParams(
            dimension_semantics=("parallel", "parallel"),
            vmem_limit_bytes=32 * 1024 * 1024,
        ),
        cost_estimate=cost,
    )(kparams, lanes)

    return out.reshape(B, n_padded)[:, :N].reshape(B, H, W)


def _reference(source_grid, params):
    x0, y0, sigma, amp = params[0], params[1], params[2], params[3]
    r2 = (source_grid[:, 0] - x0) ** 2 + (source_grid[:, 1] - y0) ** 2
    return amp * jnp.exp(-0.5 * r2 / (sigma * sigma))


def _make_grid(key, B, H, W):
    xs = jnp.linspace(-1.0, 1.0, W, dtype=jnp.float32)
    ys = jnp.linspace(-1.0, 1.0, H, dtype=jnp.float32)
    yy, xx = jnp.meshgrid(ys, xs, indexing="ij")           # (H, W) each
    base = jnp.stack([xx, yy], axis=0)                      # (2, H, W)
    jitter = 0.01 * jax.random.normal(key, (B, 2, H, W), dtype=jnp.float32)
    return base[None, :, :, :] + jitter                     # (B, 2, H, W)


if __name__ == "__main__":
    key = jax.random.PRNGKey(0)
    k0, k1 = jax.random.split(key)

    # Deterministic source parameters (x0, y0, sigma, amp).
    params = jnp.array([0.05, -0.10, 0.30, 1.25], dtype=jnp.float32)

    # Case 1: small demo, H*W already a multiple of 128 (no padding path).
    B, H, W = 2, 16, 16
    grid_a = _make_grid(k0, B, H, W)
    out_a = jax.block_until_ready(source_model_forward(grid_a, params))
    ref_a = _reference(grid_a, params)
    assert out_a.shape == (B, H, W)
    assert out_a.dtype == jnp.float32
    assert jnp.allclose(out_a, ref_a, rtol=1e-5, atol=1e-5)

    # Case 2: H*W not a multiple of 128, exercises the lane-padding path.
    B2, H2, W2 = 3, 24, 20
    grid_b = _make_grid(k1, B2, H2, W2)
    out_b = jax.block_until_ready(source_model_forward(grid_b, params))
    ref_b = _reference(grid_b, params)
    assert out_b.shape == (B2, H2, W2)
    assert jnp.allclose(out_b, ref_b, rtol=1e-5, atol=1e-5)

    print("KERNEL_OK")
</pallas_src>

<mosaic_0001>
module attributes {stable_mosaic.version = 11 : i64} {
  func.func @_source_brightness_kernel(%arg0: i32, %arg1: i32, %arg2: memref<4xf32, #tpu.memory_space<smem>>, %arg3: memref<1x2x2x128xf32, #tpu.memory_space<vmem>>, %arg4: memref<1x2x128xf32, #tpu.memory_space<vmem>>) attributes {dimension_semantics = [#tpu.dimension_semantics<parallel>, #tpu.dimension_semantics<parallel>], iteration_bounds = array<i64: 2, 1>, scalar_prefetch = 0 : i64, scratch_operands = 0 : i64, tpu.core_type = #tpu.core_type<tc>, window_params = [{transform_indices = @transform_0, window_bounds = array<i64: 4>}, {transform_indices = @transform_1, window_bounds = array<i64: 1, 2, 2, 128>}, {transform_indices = @transform_2, window_bounds = array<i64: 1, 2, 128>}]} {
    %c0 = arith.constant 0 : index
    %0 = memref.load %arg2[%c0] : memref<4xf32, #tpu.memory_space<smem>>
    %c1 = arith.constant 1 : index
    %1 = memref.load %arg2[%c1] : memref<4xf32, #tpu.memory_space<smem>>
    %c2 = arith.constant 2 : index
    %2 = memref.load %arg2[%c2] : memref<4xf32, #tpu.memory_space<smem>>
    %c3 = arith.constant 3 : index
    %3 = memref.load %arg2[%c3] : memref<4xf32, #tpu.memory_space<smem>>
    %c0_0 = arith.constant 0 : index
    %c0_1 = arith.constant 0 : index
    %c0_2 = arith.constant 0 : index
    %c0_3 = arith.constant 0 : index
    %4 = vector.load %arg3[%c0_0, %c0_1, %c0_2, %c0_3] : memref<1x2x2x128xf32, #tpu.memory_space<vmem>>, vector<1x1x2x128xf32>
    %5 = vector.shape_cast %4 : vector<1x1x2x128xf32> to vector<2x128xf32>
    %6 = vector.broadcast %0 : f32 to vector<2x128xf32>
    %7 = arith.subf %5, %6 : vector<2x128xf32>
    %c0_4 = arith.constant 0 : index
    %c1_5 = arith.constant 1 : index
    %c0_6 = arith.constant 0 : index
    %c0_7 = arith.constant 0 : index
    %8 = vector.load %arg3[%c0_4, %c1_5, %c0_6, %c0_7] : memref<1x2x2x128xf32, #tpu.memory_space<vmem>>, vector<1x1x2x128xf32>
    %9 = vector.shape_cast %8 : vector<1x1x2x128xf32> to vector<2x128xf32>
    %10 = vector.broadcast %1 : f32 to vector<2x128xf32>
    %11 = arith.subf %9, %10 : vector<2x128xf32>
    %12 = arith.mulf %7, %7 : vector<2x128xf32>
    %13 = arith.mulf %11, %11 : vector<2x128xf32>
    %14 = arith.addf %12, %13 : vector<2x128xf32>
    %15 = vector.broadcast %2 : f32 to vector<2x128xf32>
    %16 = arith.mulf %14, %15 : vector<2x128xf32>
    %17 = math.exp %16 : vector<2x128xf32>
    %18 = vector.broadcast %3 : f32 to vector<2x128xf32>
    %19 = arith.mulf %18, %17 : vector<2x128xf32>
    %c0_8 = arith.constant 0 : index
    %c0_9 = arith.constant 0 : index
    %c0_10 = arith.constant 0 : index
    %20 = vector.load %arg4[%c0_8, %c0_9, %c0_10] : memref<1x2x128xf32, #tpu.memory_space<vmem>>, vector<1x2x128xf32>
    %21 = vector.shape_cast %20 : vector<1x2x128xf32> to vector<2x128xf32>
    %22 = vector.shape_cast %19 : vector<2x128xf32> to vector<1x2x128xf32>
    tpu.vector_store %arg4[%c0_8, %c0_9, %c0_10], %22 {strides = array<i32>} : memref<1x2x128xf32, #tpu.memory_space<vmem>>, vector<1x2x128xf32>,
    return
  }
  func.func @transform_0(%arg0: i32, %arg1: i32) -> i32 {
    %c0_i32 = arith.constant 0 : i32
    %c0_i32_0 = arith.constant 0 : i32
    return %c0_i32 : i32
  }
  func.func @transform_1(%arg0: i32, %arg1: i32) -> (i32, i32, i32, i32) {
    %c0_i32 = arith.constant 0 : i32
    %c0_i32_0 = arith.constant 0 : i32
    %c0_i32_1 = arith.constant 0 : i32
    return %arg0, %c0_i32, %arg1, %c0_i32_0 : i32, i32, i32, i32
  }
  func.func @transform_2(%arg0: i32, %arg1: i32) -> (i32, i32, i32) {
    %c0_i32 = arith.constant 0 : i32
    %c0_i32_0 = arith.constant 0 : i32
    return %arg0, %arg1, %c0_i32 : i32, i32, i32
  }
}

</mosaic_0001>

<llo_original>
// kernel: tpu_custom_call.1
$region0: #{tpu_custom_call.1}
  #allocation0 [shape = 'u32[]', space=smem, size = 0x4, offset = 0x4, fixed_abs, tag = 'smem constant byte address 0x4 - core index']
  #allocation1 [shape = 'u32[72,128]{1,0:T(1,128)}', space=vmem, size = 0x9000, scoped, tag = 'internal scratch']
  %s0 = inlined_call_operand.hbm [shape: f32[4], index: 0, kind: input, shape index: {}]
  %s1 = inlined_call_operand.hbm [shape: f32[2,2,2,128], index: 1, kind: input, shape index: {}]
  %s2 = inlined_call_operand.hbm [shape: f32[2,2,128], index: 2, kind: output, shape index: {}]
  %s3 = sld [smem:[#allocation0]]
  $region49: #{tpu_custom_call.1} parent=0
    _
  %s5 = ssub.s32 1, %s3
  %s6 = scalar_select 0, %s5, %s3
  $region1: #{tpu_custom_call.1} parent=0
    #allocation2 [shape = 'u8[512]{0}', space=smem, size = 0x200, scoped, tag = 'input window, operand 0, single buffered']
    #allocation3 [shape = 's32[2]{0}', space=sflag, size = 0x8, scoped, tag = 'scoped memory for tpu_custom_call.1']
    #allocation4 [shape = 's32[2]{0}', space=sflag, size = 0x8, scoped, tag = 'scoped memory for tpu_custom_call.1']
    #allocation5 [shape = 's32[2]{0}', space=sflag, size = 0x8, scoped, tag = 'scoped memory for tpu_custom_call.1']
    #allocation6 [shape = 'u8[4096]{0}', space=vmem, size = 0x1000, scoped, tag = 'input window, operand 1']
    #allocation7 [shape = 'u8[2048]{0}', space=vmem, size = 0x800, scoped, tag = 'output window, operand 0']
    %7 = vsyncpa [#allocation5], 0
    %8 = vsyncpa [#allocation3], 0
    %s9 = scalar_lea.sflag [#allocation3], 1
    %10 = vsyncpa %s9, 0
    %11 = vsyncpa [#allocation4], 0
    %s12 = scalar_lea.sflag [#allocation4], 1
    %13 = vsyncpa %s12, 0
    loop: start=0, step=1, limit=4
    $region2: #{tpu_custom_call.1} parent=1 // loop_pre_header
      _
    $region3: #{tpu_custom_call.1} parent=1 // loop_header
      %s15 = sphi 0, %s19
      %p16 = scmp.ge.s32.totalorder %s15, 4
      %s22 = sphi 0, %s34
      %s23 = sphi 0, %s30
      %s24 = sphi 0, %s22
      %s25 = sphi 0, %s23
      %s26 = sphi 0, %s24
      %s27 = sphi 0, %s25
      %s35 = sphi 0, %s35
      %s37 = sphi 0, %s35
      %s38 = sphi 0, %s37
      %s52 = sphi 0, %s38
      %s60 = sphi 0, %s62
      %s63 = sphi 0, %s60
      %s64 = sphi 0, %s63
      %s80 = sphi 0, %s64
      %s88 = sphi 0, %s90
      %s91 = sphi 0, %s88
      %s92 = sphi 0, %s91
      %s108 = sphi 0, %s92
    $region4: #{tpu_custom_call.1} parent=1 // loop_header_branch
      %18 = sbr.rel (%p16) target = $region8
    $region5: #{tpu_custom_call.1} parent=1 // loop_body
      %s20 = ssub.s32 %s15, 1
      %s21 = ssub.s32 %s15, 2
      %s28 = sadd.s32 1, %s23
      %p29 = scmp.ge.s32.totalorder %s28, 1
      %s30 = scalar_select %p29, 0, %s28
      %s31 = sadd.s32 1, %s22
      %s32 = scalar_select %p29, %s31, %s22
      %p33 = scmp.ge.s32.totalorder %s32, 2
      %s34 = scalar_select %p33, 0, %s32
      %s36 = sadd.s32 %s35, 1
      %p39 = scmp.eq.s32.totalorder %s15, 1
      %p40 = scmp.ne.s32.totalorder %s35, %s37
      %p41 = scmp.eq.s32.totalorder %s15, 0
      %p42 = por %p40, %p41
      %p43 = scmp.ne.s32.totalorder %s35, %s37
      %p44 = scmp.eq.s32.totalorder %s20, 1
      %p45 = por %p43, %p44
      %p46 = scmp.ne.s32.totalorder %s37, %s38
      %p47 = scmp.eq.s32.totalorder %s20, 0
      %p48 = por %p46, %p47
      %p49 = scmp.ne.s32.totalorder %s37, %s38
      %p50 = scmp.eq.s32.totalorder %s21, 1
      %p51 = por %p49, %p50
      %p53 = scmp.ne.s32.totalorder %s38, %s52
      %p54 = scmp.eq.s32.totalorder %s21, 0
      %p55 = por %p53, %p54
      %s56 = ssub.s32 %s22, %s34
      %s57 = ssub.s32 %s23, %s30
      %s58 = sor.u32 %s56, %s57
      %p59 = scmp.eq.s32.totalorder %s58, 0
      %s61 = sadd.s32 %s60, 1
      %s62 = scalar_select %p59, %s60, %s61
      %p65 = pneg %p59
      %p66 = scmp.eq.s32.totalorder %s15, 1
      %p67 = por %p65, %p66
      %p68 = scmp.ne.s32.totalorder %s60, %s63
      %p69 = scmp.eq.s32.totalorder %s15, 0
      %p70 = por %p68, %p69
      %p71 = scmp.ne.s32.totalorder %s60, %s63
      %p72 = scmp.eq.s32.totalorder %s20, 1
      %p73 = por %p71, %p72
      %p74 = scmp.ne.s32.totalorder %s63, %s64
      %p75 = scmp.eq.s32.totalorder %s20, 0
      %p76 = por %p74, %p75
      %p77 = scmp.ne.s32.totalorder %s63, %s64
      %p78 = scmp.eq.s32.totalorder %s21, 1
      %p79 = por %p77, %p78
      %p81 = scmp.ne.s32.totalorder %s64, %s80
      %p82 = scmp.eq.s32.totalorder %s21, 0
      %p83 = por %p81, %p82
      %s84 = ssub.s32 %s22, %s34
      %s85 = ssub.s32 %s23, %s30
      %s86 = sor.u32 %s84, %s85
      %p87 = scmp.eq.s32.totalorder %s86, 0
      %s89 = sadd.s32 %s88, 1
      %s90 = scalar_select %p87, %s88, %s89
      %p93 = pneg %p87
      %p94 = scmp.eq.s32.totalorder %s15, 1
      %p95 = por %p93, %p94
      %p96 = scmp.ne.s32.totalorder %s88, %s91
      %p97 = scmp.eq.s32.totalorder %s15, 0
      %p98 = por %p96, %p97
      %p99 = scmp.ne.s32.totalorder %s88, %s91
      %p100 = scmp.eq.s32.totalorder %s20, 1
      %p101 = por %p99, %p100
      %p102 = scmp.ne.s32.totalorder %s91, %s92
      %p103 = scmp.eq.s32.totalorder %s20, 0
      %p104 = por %p102, %p103
      %p105 = scmp.ne.s32.totalorder %s91, %s92
      %p106 = scmp.eq.s32.totalorder %s21, 1
      %p107 = por %p105, %p106
      %p109 = scmp.ne.s32.totalorder %s92, %s108
      %p110 = scmp.eq.s32.totalorder %s21, 0
      %p111 = por %p109, %p110
      %p112 = scmp.le.s32.totalorder 1, %s15
      %p113 = scmp.lt.s32.totalorder %s15, 3
      %p114 = pnand %p112, %p113
      %p115 = pneg %p114
      // Predicated region
      $region9: #{tpu_custom_call.1} parent=5 // pred_check
        _
      $region10: #{tpu_custom_call.1} parent=5 // pred_check_branch
        %117 = sbr.rel (%p114) target = $region12
      $region11: #{tpu_custom_call.1} parent=5 // pred_region
        %s118 = ssub.s32 %s15, 1
        // Predicated region
        $region13: #{tpu_custom_call.1} parent=11 // pred_check
          %p119 = pneg %p48
        $region14: #{tpu_custom_call.1} parent=11 // pred_check_branch
          %121 = sbr.rel (%p119) target = $region16
        $region15: #{tpu_custom_call.1} parent=11 // pred_region
          %123 = vsyncadd [#allocation5], 0
          %s125 = sshll.u32 %s0, 4
          %s126 = int_to_ptr.hbm [resolvable:$true] %s125
          %128 = dma.hbm_to_smem %s126, 16, [#allocation2], [#allocation5]
        $region16: #{tpu_custom_call.1} parent=11 // pred_fallthru
          _
      $region12: #{tpu_custom_call.1} parent=5 // pred_fallthru
        _
      %p129 = scmp.lt.s32.totalorder %s15, 2
      // Predicated region
      $region17: #{tpu_custom_call.1} parent=5 // pred_check
        %p130 = pneg %p129
      $region18: #{tpu_custom_call.1} parent=5 // pred_check_branch
        %132 = sbr.rel (%p130) target = $region20
      $region19: #{tpu_custom_call.1} parent=5 // pred_region
        // Predicated region
        $region21: #{tpu_custom_call.1} parent=19 // pred_check
          %p133 = pneg %p70
        $region22: #{tpu_custom_call.1} parent=19 // pred_check_branch
          %135 = sbr.rel (%p133) target = $region24
        $region23: #{tpu_custom_call.1} parent=19 // pred_region
          %s136 = sand.u32 %s60, 1
          %s137 = scalar_lea.sflag [#allocation3], %s136
          %s138 = sand.u32 %s60, 1
          %s139 = smul.addr %s138, 4
          %s140 = scalar_lea.vmem [#allocation6], %s139
          %142 = vsyncadd %s137, 0
          %s143 = smul.addr %s22, 2
          %s144 = sadd.s32 %s23, %s143
          %s145 = smul.addr %s144, 2
          %s146 = scalar_lea.hbm %s1, %s145
          %s147 = sshll.u32 %s146, 4
          %s148 = int_to_ptr.hbm [resolvable:$true] %s147
          %s149 = sshll.u32 %s140, 4
          %s150 = int_to_ptr.vmem [resolvable:$true] %s149
          %155 = dma.hbm_to_vmem [thread:$0]  %s148, 64, %s150, %s137, 32, 32, 2
        $region24: #{tpu_custom_call.1} parent=19 // pred_fallthru
          _
      $region20: #{tpu_custom_call.1} parent=5 // pred_fallthru
        _
      %p156 = scmp.le.s32.totalorder 1, %s15
      %p157 = scmp.lt.s32.totalorder %s15, 3
      %p158 = pnand %p156, %p157
      %p159 = pneg %p158
      // Predicated region
      $region25: #{tpu_custom_call.1} parent=5 // pred_check
        _
      $region26: #{tpu_custom_call.1} parent=5 // pred_check_branch
        %161 = sbr.rel (%p158) target = $region28
      $region27: #{tpu_custom_call.1} parent=5 // pred_region
        %s162 = ssub.s32 %s15, 1
        // Predicated region
        $region29: #{tpu_custom_call.1} parent=27 // pred_check
          %p163 = pneg %p48
        $region30: #{tpu_custom_call.1} parent=27 // pred_check_branch
          %165 = sbr.rel (%p163) target = $region32
        $region31: #{tpu_custom_call.1} parent=27 // pred_region
          %167 = dma.done [#allocation5], 16
        $region32: #{tpu_custom_call.1} parent=27 // pred_fallthru
          _
        %s168 = sand.u32 %s63, 1
        %s169 = scalar_lea.sflag [#allocation3], %s168
        %s170 = sand.u32 %s63, 1
        %s171 = smul.addr %s170, 4
        %s172 = scalar_lea.vmem [#allocation6], %s171
        // Predicated region
        $region33: #{tpu_custom_call.1} parent=27 // pred_check
          %p173 = pneg %p76
        $region34: #{tpu_custom_call.1} parent=27 // pred_check_branch
          %175 = sbr.rel (%p173) target = $region36
        $region35: #{tpu_custom_call.1} parent=27 // pred_region
          %177 = dma.done %s169, 64
        $region36: #{tpu_custom_call.1} parent=27 // pred_fallthru
          _
        %178 = sfence
        %p179 = pneg %p48
        %p180 = pneg %p45
        %s181 = sand.u32 %s63, 1
        %s182 = scalar_lea.sflag [#allocation3], %s181
        %s183 = sand.u32 %s63, 1
        %s184 = smul.addr %s183, 4
        %s185 = scalar_lea.vmem [#allocation6], %s184
        %p186 = pneg %p76
        %p187 = pneg %p73
        %p188 = pneg %p104
        %p189 = pneg %p101
        %s190 = sand.u32 %s91, 1
        %s191 = scalar_lea.sflag [#allocation4], %s190
        %s192 = sand.u32 %s91, 1
        %s193 = smul.addr %s192, 2
        %s194 = scalar_lea.vmem [#allocation7], %s193
        %s195 = sld [smem:[#allocation2]]
        %s196 = sld [smem:[#allocation2 + $0x1]]
        %s197 = sld [smem:[#allocation2 + $0x2]]
        %s198 = sld [smem:[#allocation2 + $0x3]]
        %v199 = vld [vmem:[%s172] sm:$0x3]
        %v200 = vstv %s195
        %v201 = vsub.f32 %v199, %v200
        %s202 = scalar_lea.vmem %s172, 2 [#allocation6]
        %v203 = vld [vmem:[%s202] sm:$0x3]
        %v204 = vstv %s196
        %v205 = vsub.f32 %v203, %v204
        %v206 = vmul.f32 %v201, %v201
        %v207 = vmul.f32 %v205, %v205
        %v208 = vadd.f32 %v206, %v207
        %v209 = vstv %s197
        %v210 = vmul.f32 %v208, %v209
        %v211 = vmul.f32 %v210, 1.442695
        %v212 = vpow.pop %v211
        %v213 = vstv %s198
        %v214 = vmul.f32 %v213, %v212
        %215 = vst [vmem:[%s194] sm:$0x3] %v214
        %s216 = sand.u32 %s91, 1
        %s217 = scalar_lea.sflag [#allocation4], %s216
        %s218 = sand.u32 %s91, 1
        %s219 = smul.addr %s218, 2
        %s220 = scalar_lea.vmem [#allocation7], %s219
        // Predicated region
        $region37: #{tpu_custom_call.1} parent=27 // pred_check
          %p221 = pneg %p101
        $region38: #{tpu_custom_call.1} parent=27 // pred_check_branch
          %223 = sbr.rel (%p221) target = $region40
        $region39: #{tpu_custom_call.1} parent=27 // pred_region
          %225 = vsyncadd %s217, 0
          %s226 = sadd.s32 %s25, %s24
          %s227 = smul.addr %s226, 2
          %s228 = scalar_lea.hbm %s2, %s227
          %s230 = sshll.u32 %s220, 4
          %s231 = int_to_ptr.vmem [resolvable:$true] %s230
          %s232 = sshll.u32 %s228, 4
          %s233 = int_to_ptr.hbm [resolvable:$true] %s232
          %235 = dma.vmem_to_hbm [thread:$0]  %s231, 32, %s233, %s217
        $region40: #{tpu_custom_call.1} parent=27 // pred_fallthru
          _
      $region28: #{tpu_custom_call.1} parent=5 // pred_fallthru
        _
      %p236 = scmp.le.s32.totalorder 2, %s15
      // Predicated region
      $region41: #{tpu_custom_call.1} parent=5 // pred_check
        %p237 = pneg %p236
      $region42: #{tpu_custom_call.1} parent=5 // pred_check_branch
        %239 = sbr.rel (%p237) target = $region44
      $region43: #{tpu_custom_call.1} parent=5 // pred_region
        %s240 = ssub.s32 %s15, 2
        // Predicated region
        $region45: #{tpu_custom_call.1} parent=43 // pred_check
          %p241 = pneg %p107
        $region46: #{tpu_custom_call.1} parent=43 // pred_check_branch
          %243 = sbr.rel (%p241) target = $region48
        $region47: #{tpu_custom_call.1} parent=43 // pred_region
          %s244 = sand.u32 %s92, 1
          %s245 = scalar_lea.sflag [#allocation4], %s244
          %s246 = sand.u32 %s92, 1
          %s247 = smul.addr %s246, 2
          %s248 = scalar_lea.vmem [#allocation7], %s247
          %250 = dma.done %s245, 32
        $region48: #{tpu_custom_call.1} parent=43 // pred_fallthru
          _
      $region44: #{tpu_custom_call.1} parent=5 // pred_fallthru
        _
    $region6: #{tpu_custom_call.1} parent=1 // loop_footer
      %s19 = sadd.s32 1, %s15
    $region7: #{tpu_custom_call.1} parent=1 // loop_footer_branch
      %14 = sbr.rel target = $region3
    $region8: #{tpu_custom_call.1} parent=1 // loop_exit
      _
    %251 = vsyncpa [#allocation3], 1
    %s252 = scalar_lea.sflag [#allocation3], 1
    %253 = vsyncpa %s252, 1
    %254 = vsyncpa [#allocation4], 1
    %s255 = scalar_lea.sflag [#allocation4], 1
    %256 = vsyncpa %s255, 1
    %257 = vsyncpa [#allocation5], 1
    %s258 = scalar_lea.sflag [#allocation5], 1
    %259 = vsyncpa %s258, 1

</llo_original>
